<compile_context>
chip_gen: v7x
topology: tpu7x:2x2x1
jax: 0.10.0
libtpu: 0.0.40
codegen_flags: <defaults>
</compile_context>

<pallas_src>
import functools

import jax
import jax.numpy as jnp
from jax import lax
from jax.experimental import pallas as pl
from jax.experimental.pallas import tpu as pltpu

EPSILON = 1e-9
REL_SIGMA = 0.15

# Loss config (cfg.funcs / cfg.weights)
LOSS_NAMES = ["ddc_1", "ddc_2", "ddc_3"]
LOSS_WEIGHTS = [1.0, 1.0, 1.0]

# 16 steps resolve the (bit-pattern) median to <= max_bits / 2^16 ulp, i.e.
# ~1e-3 relative in the worst case -- below the bf16 matmul noise introduced
# elsewhere.  Use 32 for bit-exact parity with torch.median.
_MEDIAN_BISECT_STEPS = 16

_SQRT2 = 1.4142135623730951


def _sum_all(x):
    """Full reduction to a (1, 1) array via two single-axis reductions."""
    return jnp.sum(jnp.sum(x, axis=1, keepdims=True), axis=0, keepdims=True)


def _max_all(x):
    return jnp.max(jnp.max(x, axis=1, keepdims=True), axis=0, keepdims=True)


def _d_cs_from_nom(nom, k):
    """Cauchy-Schwarz divergence term from nom = M^T K M  (k, k), K symmetric."""
    rows = lax.broadcasted_iota(jnp.int32, (k, k), 0)
    cols = lax.broadcasted_iota(jnp.int32, (k, k), 1)
    eye = rows == cols
    diag = jnp.sum(jnp.where(eye, nom, 0.0), axis=1, keepdims=True)        # (k,1)
    dnom_sq = lax.dot_general(diag, diag, (((1,), (1,)), ((), ())),
                              preferred_element_type=jnp.float32)          # (k,k)
    frac = jnp.maximum(nom, EPSILON) / jnp.sqrt(
        jnp.maximum(dnom_sq, EPSILON * EPSILON))
    # frac is symmetric -> strict upper-triangle sum = (sum - trace) / 2, so
    # 2/(k(k-1)) * triu_sum == (sum - trace) / (k(k-1)).
    total = _sum_all(frac)
    trace = _sum_all(jnp.where(eye, frac, 0.0))
    return (total - trace) * (1.0 / (k * (k - 1)))                         # (1,1)


def _loss_kernel(h_ref, a_ref, out_ref):
    h = h_ref[...].astype(jnp.float32)                 # (n, hdim)  net.hidden
    A = a_ref[...].astype(jnp.float32)                 # (n, k)     net.output
    n, hdim = h.shape
    k = A.shape[1]

    # ---- pairwise squared distances: one fused MXU call --------------------
    # dist[i,j] = ||h_i||^2 + ||h_j||^2 - 2 h_i.h_j
    #           = [-sqrt2*h_i | 1 | x2_i] . [sqrt2*h_j | x2_j | 1]
    x2 = jnp.sum(h * h, axis=1, keepdims=True)                              # (n, 1)
    ones_col = jnp.ones((n, 1), dtype=jnp.float32)
    L = jnp.concatenate([h * (-_SQRT2), ones_col, x2], axis=1)              # (n, hdim+2)
    R = jnp.concatenate([h * _SQRT2, x2, ones_col], axis=1)                 # (n, hdim+2)
    # Kept in f32 on purpose: bf16 operands would inject ~||h||^2 * 2^-8 of
    # noise into the cancelling (near-zero) distances.
    dist = jnp.maximum(
        lax.dot_general(L, R, (((1,), (1,)), ((), ())),
                        preferred_element_type=jnp.float32), 0.0)           # (n, n)

    # ---- lower median of dist via bit-pattern bisection ---------------------
    # dist >= 0, so float ordering == int32 bit-pattern ordering.  Bisect in
    # bit space but compare in float space each step (no (n,n) int buffer).
    # Find the smallest v with count(dist <= v) >= (n^2-1)//2 + 1, which is
    # torch's lower median over all n^2 entries (diagonal zeros included).
    target = jnp.full((1, 1), (n * n - 1) // 2 + 1, dtype=jnp.int32)
    lo0 = jnp.zeros((1, 1), jnp.int32)
    hi0 = jnp.maximum(pltpu.bitcast(_max_all(dist), jnp.int32), 0)          # (1, 1)

    def _bisect(_, carry):
        lo, hi = carry
        mid = lo + ((hi - lo) >> 1)
        midf = pltpu.bitcast(mid, jnp.float32)                              # (1, 1)
        cnt = _sum_all((dist <= midf).astype(jnp.int32))                    # exact
        take_lower = cnt >= target
        return (jnp.where(take_lower, lo, mid + 1),
                jnp.where(take_lower, mid, hi))

    lo_f, _ = lax.fori_loop(0, _MEDIAN_BISECT_STEPS, _bisect, (lo0, hi0))
    median = pltpu.bitcast(lo_f, jnp.float32)                               # (1, 1)

    # ---- hidden_kernel extra: K = exp(-dist / (2 sigma2)) -------------------
    sigma2 = jnp.maximum(REL_SIGMA * median, EPSILON)                       # (1, 1)
    # K lives only as an MXU operand below -> keep it in bf16 (native MXU
    # rate, half the VMEM footprint); ~2^-8 relative rounding on the loss.
    K = jnp.exp(dist * (-0.5 / sigma2)).astype(jnp.bfloat16)                # (n, n)

    # ---- ddc_2 (closed form, no n x n work) ---------------------------------
    A2 = A * A
    a2 = jnp.sum(A2, axis=1, keepdims=True)                                 # (n, 1)
    fro = _sum_all(a2)                                                      # (1, 1)
    colsum = jnp.sum(A, axis=0, keepdims=True)                              # (1, k)
    ddc2 = (_sum_all(colsum * colsum) - fro) * (1.0 / (n * (n - 1)))        # (1, 1)

    # ---- ddc_3 cluster-space matrix: cdist(A, I_k) = a2 - 2 A + 1 -----------
    m = jnp.exp(-(a2 - 2.0 * A + 1.0))                                      # (n, k)

    # ---- ddc_1 / ddc_3: one shared bf16 pass over K -------------------------
    M2 = jnp.concatenate([A, m], axis=1)                                    # (n, 2k) f32
    KM2 = jnp.dot(K, M2.astype(jnp.bfloat16),
                  preferred_element_type=jnp.float32)                       # (n, 2k) f32
    nom_full = lax.dot_general(M2, KM2, (((0,), (0,)), ((), ())),
                               preferred_element_type=jnp.float32)          # (2k, 2k)
    ddc1 = _d_cs_from_nom(nom_full[:k, :k], k)
    ddc3 = _d_cs_from_nom(nom_full[k:, k:], k)

    # ---- lane-dense output row: [ddc1, ddc2, ddc3, 0, ...] ------------------
    lane = lax.broadcasted_iota(jnp.int32, (1, out_ref.shape[1]), 1)
    out_ref[...] = (jnp.where(lane == 0, ddc1, 0.0)
                    + jnp.where(lane == 1, ddc2, 0.0)
                    + jnp.where(lane == 2, ddc3, 0.0))


def _vmem_capacity_bytes():
    """Generation-aware VMEM capacity; conservative fallback if unqueryable."""
    try:
        info = pltpu.get_tpu_info()
        cap = getattr(info, "vmem_capacity_bytes", None)
        if cap:
            return int(cap)
    except Exception:
        pass
    return 64 << 20   # v7x per-TensorCore VMEM (the smallest of the family)


def _ddc_loss_row(hidden, output):
    n, hdim = hidden.shape
    k = output.shape[1]
    assert k >= 2, "DDC losses need at least 2 clusters"
    cap = _vmem_capacity_bytes()
    # Live set: dist f32 (4 n^2) + K bf16 (2 n^2) + one transient n^2 f32
    # matmul result + small (n x ...) operands + double-buffered inputs.
    est = 10 * n * n + 16 * n * (hdim + 4 * k + 8) + (6 << 20)
    vmem_limit = int(min(max(est, 32 << 20), int(cap * 0.85)))
    return pl.pallas_call(
        _loss_kernel,
        out_shape=jax.ShapeDtypeStruct((1, 128), jnp.float32),
        grid=(1,),
        in_specs=[
            pl.BlockSpec((n, hdim), lambda i: (0, 0)),   # net.hidden
            pl.BlockSpec((n, k), lambda i: (0, 0)),      # net.output
        ],
        out_specs=pl.BlockSpec((1, 128), lambda i: (0, 0)),
        compiler_params=pltpu.CompilerParams(
            dimension_semantics=("arbitrary",),
            vmem_limit_bytes=vmem_limit,
        ),
    )(hidden, output)


# ----------------------------------------------------------------------------
# Loss.forward equivalent
# ----------------------------------------------------------------------------
@functools.partial(jax.jit, static_argnames=("ignore_in_total",))
def loss_forward(hidden, output, ignore_in_total=()):
    """hidden: (n, hdim) net.hidden; output: (n, k) net.output (softmax probs).

    Inputs may be f32 or bf16; the kernel upcasts internally.
    """
    row = _ddc_loss_row(hidden, output)
    vals = [row[0, 0], row[0, 1], row[0, 2]]
    loss_values = {}
    for name, weight, value in zip(LOSS_NAMES, LOSS_WEIGHTS, vals):
        loss_values[name] = weight * value
    loss_values["tot"] = sum(
        loss_values[name] for name in loss_values if name not in ignore_in_total)
    return loss_values


if __name__ == "__main__":
    key = jax.random.PRNGKey(0)
    k1, k2 = jax.random.split(key)
    n, hdim, n_clusters = 64, 32, 8                  # small synthetic "net" state
    hidden = jax.random.normal(k1, (n, hdim), dtype=jnp.float32)     # net.hidden
    logits = jax.random.normal(k2, (n, n_clusters), dtype=jnp.float32)
    output = jax.nn.softmax(logits, axis=1)                          # net.output

    losses = loss_forward(hidden, output)
    jax.block_until_ready(losses["tot"])
    print("KERNEL_OK")
</pallas_src>

<mosaic_0001>
module attributes {stable_mosaic.version = 11 : i64} {
  func.func @_loss_kernel(%arg0: i32, %arg1: memref<64x32xf32, #tpu.memory_space<vmem>>, %arg2: memref<64x8xf32, #tpu.memory_space<vmem>>, %arg3: memref<1x128xf32, #tpu.memory_space<vmem>>) attributes {dimension_semantics = [#tpu.dimension_semantics<arbitrary>], iteration_bounds = array<i64: 1>, scalar_prefetch = 0 : i64, scratch_operands = 0 : i64, tpu.core_type = #tpu.core_type<tc>, window_params = [{pipeline_mode = #tpu.pipeline_mode<synchronous>, transform_indices = @transform_0, window_bounds = array<i64: 64, 32>}, {pipeline_mode = #tpu.pipeline_mode<synchronous>, transform_indices = @transform_1, window_bounds = array<i64: 64, 8>}, {pipeline_mode = #tpu.pipeline_mode<synchronous>, transform_indices = @transform_2, window_bounds = array<i64: 1, 128>}]} {
    %c0 = arith.constant 0 : index
    %c0_0 = arith.constant 0 : index
    %0 = vector.load %arg1[%c0, %c0_0] : memref<64x32xf32, #tpu.memory_space<vmem>>, vector<64x32xf32>
    %c0_1 = arith.constant 0 : index
    %c0_2 = arith.constant 0 : index
    %1 = vector.load %arg2[%c0_1, %c0_2] : memref<64x8xf32, #tpu.memory_space<vmem>>, vector<64x8xf32>
    %2 = arith.mulf %0, %0 : vector<64x32xf32>
    %cst = arith.constant dense<0.000000e+00> : vector<64xf32>
    %3 = vector.multi_reduction <add>, %2, %cst [1] : vector<64x32xf32> to vector<64xf32>
    %4 = vector.shape_cast %3 : vector<64xf32> to vector<64x1xf32>
    %cst_3 = arith.constant 1.000000e+00 : f32
    %5 = vector.broadcast %cst_3 : f32 to vector<64x1xf32>
    %cst_4 = arith.constant -1.41421354 : f32
    %6 = vector.broadcast %cst_4 : f32 to vector<64x32xf32>
    %7 = arith.mulf %0, %6 : vector<64x32xf32>
    %8 = tpu.concatenate %7, %5, %4 in 1 : vector<64x32xf32>, vector<64x1xf32>, vector<64x1xf32> -> vector<64x34xf32>
    %cst_5 = arith.constant 1.41421354 : f32
    %9 = vector.broadcast %cst_5 : f32 to vector<64x32xf32>
    %10 = arith.mulf %0, %9 : vector<64x32xf32>
    %11 = tpu.concatenate %10, %4, %5 in 1 : vector<64x32xf32>, vector<64x1xf32>, vector<64x1xf32> -> vector<64x34xf32>
    %cst_6 = arith.constant dense<0.000000e+00> : vector<64x64xf32>
    %12 = tpu.matmul %8, %11, %cst_6 {dimension_numbers = #tpu.dot_dimension_numbers<[1], [1], [0], [0], [0, 0, 1, 0], [], []>} : vector<64x34xf32>, vector<64x34xf32>, vector<64x64xf32> -> vector<64x64xf32>
    %cst_7 = arith.constant 0.000000e+00 : f32
    %13 = vector.broadcast %cst_7 : f32 to vector<64x64xf32>
    %14 = arith.maximumf %12, %13 : vector<64x64xf32>
    %c2048_i32 = arith.constant 2048 : i32
    %15 = vector.broadcast %c2048_i32 : i32 to vector<1x1xi32>
    %c0_i32 = arith.constant 0 : i32
    %16 = vector.broadcast %c0_i32 : i32 to vector<1x1xi32>
    %cst_8 = arith.constant dense<0xFF800000> : vector<64xf32>
    %17 = vector.multi_reduction <maximumf>, %14, %cst_8 [1] : vector<64x64xf32> to vector<64xf32>
    %18 = vector.shape_cast %17 : vector<64xf32> to vector<64x1xf32>
    %cst_9 = arith.constant dense<0xFF800000> : vector<1xf32>
    %19 = vector.multi_reduction <maximumf>, %18, %cst_9 [0] : vector<64x1xf32> to vector<1xf32>
    %20 = vector.shape_cast %19 : vector<1xf32> to vector<1x1xf32>
    %21 = tpu.bitcast %20 : vector<1x1xf32> -> vector<1x1xi32>
    %c0_i32_10 = arith.constant 0 : i32
    %22 = vector.broadcast %c0_i32_10 : i32 to vector<1x1xi32>
    %23 = arith.maxsi %21, %22 : vector<1x1xi32>
    %c0_i32_11 = arith.constant 0 : i32
    %c16_i32 = arith.constant 16 : i32
    %24 = arith.addi %c0_i32_11, %c16_i32 : i32
    %c1_i32 = arith.constant 1 : i32
    %25:2 = scf.for %arg4 = %c0_i32_11 to %24 step %c1_i32 iter_args(%arg5 = %16, %arg6 = %23) -> (vector<1x1xi32>, vector<1x1xi32>)  : i32 {
      %145 = arith.subi %arg6, %arg5 : vector<1x1xi32>
      %c1_i32_56 = arith.constant 1 : i32
      %146 = vector.broadcast %c1_i32_56 : i32 to vector<1x1xi32>
      %147 = arith.shrsi %145, %146 : vector<1x1xi32>
      %148 = arith.addi %arg5, %147 : vector<1x1xi32>
      %149 = tpu.bitcast %148 : vector<1x1xi32> -> vector<1x1xf32>
      %150 = vector.broadcast %149 : vector<1x1xf32> to vector<64x64xf32>
      %151 = arith.cmpf ole, %14, %150 : vector<64x64xf32>
      %152 = arith.extui %151 : vector<64x64xi1> to vector<64x64xi32>
      %cst_57 = arith.constant dense<0> : vector<64xi32>
      %153 = vector.multi_reduction <add>, %152, %cst_57 [1] : vector<64x64xi32> to vector<64xi32>
      %154 = vector.shape_cast %153 : vector<64xi32> to vector<64x1xi32>
      %cst_58 = arith.constant dense<0> : vector<1xi32>
      %155 = vector.multi_reduction <add>, %154, %cst_58 [0] : vector<64x1xi32> to vector<1xi32>
      %156 = vector.shape_cast %155 : vector<1xi32> to vector<1x1xi32>
      %157 = arith.cmpi sge, %156, %15 : vector<1x1xi32>
      %c1_i32_59 = arith.constant 1 : i32
      %158 = vector.broadcast %c1_i32_59 : i32 to vector<1x1xi32>
      %159 = arith.addi %148, %158 : vector<1x1xi32>
      %160 = arith.select %157, %arg5, %159 : vector<1x1xi1>, vector<1x1xi32>
      %161 = arith.select %157, %148, %arg6 : vector<1x1xi1>, vector<1x1xi32>
      scf.yield %160, %161 : vector<1x1xi32>, vector<1x1xi32>
    }
    %26 = tpu.bitcast %25#0 : vector<1x1xi32> -> vector<1x1xf32>
    %cst_12 = arith.constant 1.500000e-01 : f32
    %27 = vector.broadcast %cst_12 : f32 to vector<1x1xf32>
    %28 = arith.mulf %27, %26 : vector<1x1xf32>
    %cst_13 = arith.constant 9.99999971E-10 : f32
    %29 = vector.broadcast %cst_13 : f32 to vector<1x1xf32>
    %30 = arith.maximumf %28, %29 : vector<1x1xf32>
    %cst_14 = arith.constant -5.000000e-01 : f32
    %31 = vector.broadcast %cst_14 : f32 to vector<1x1xf32>
    %32 = arith.divf %31, %30 : vector<1x1xf32>
    %33 = vector.broadcast %32 : vector<1x1xf32> to vector<64x64xf32>
    %34 = arith.mulf %14, %33 : vector<64x64xf32>
    %35 = math.exp %34 : vector<64x64xf32>
    %36 = arith.truncf %35 : vector<64x64xf32> to vector<64x64xbf16>
    %37 = arith.mulf %1, %1 : vector<64x8xf32>
    %cst_15 = arith.constant dense<0.000000e+00> : vector<64xf32>
    %38 = vector.multi_reduction <add>, %37, %cst_15 [1] : vector<64x8xf32> to vector<64xf32>
    %39 = vector.shape_cast %38 : vector<64xf32> to vector<64x1xf32>
    %cst_16 = arith.constant dense<0.000000e+00> : vector<64xf32>
    %40 = vector.multi_reduction <add>, %39, %cst_16 [1] : vector<64x1xf32> to vector<64xf32>
    %41 = vector.shape_cast %40 : vector<64xf32> to vector<64x1xf32>
    %cst_17 = arith.constant dense<0.000000e+00> : vector<1xf32>
    %42 = vector.multi_reduction <add>, %41, %cst_17 [0] : vector<64x1xf32> to vector<1xf32>
    %43 = vector.shape_cast %42 : vector<1xf32> to vector<1x1xf32>
    %cst_18 = arith.constant dense<0.000000e+00> : vector<8xf32>
    %44 = vector.multi_reduction <add>, %1, %cst_18 [0] : vector<64x8xf32> to vector<8xf32>
    %45 = vector.shape_cast %44 : vector<8xf32> to vector<1x8xf32>
    %46 = arith.mulf %45, %45 : vector<1x8xf32>
    %cst_19 = arith.constant dense<0.000000e+00> : vector<1xf32>
    %47 = vector.multi_reduction <add>, %46, %cst_19 [1] : vector<1x8xf32> to vector<1xf32>
    %48 = vector.shape_cast %47 : vector<1xf32> to vector<1x1xf32>
    %cst_20 = arith.constant dense<0.000000e+00> : vector<1xf32>
    %49 = vector.multi_reduction <add>, %48, %cst_20 [0] : vector<1x1xf32> to vector<1xf32>
    %50 = vector.shape_cast %49 : vector<1xf32> to vector<1x1xf32>
    %51 = arith.subf %50, %43 : vector<1x1xf32>
    %cst_21 = arith.constant 2.48015887E-4 : f32
    %52 = vector.broadcast %cst_21 : f32 to vector<1x1xf32>
    %53 = arith.mulf %51, %52 : vector<1x1xf32>
    %cst_22 = arith.constant 2.000000e+00 : f32
    %54 = vector.broadcast %cst_22 : f32 to vector<64x8xf32>
    %55 = arith.mulf %54, %1 : vector<64x8xf32>
    %56 = vector.broadcast %39 : vector<64x1xf32> to vector<64x8xf32>
    %57 = arith.subf %56, %55 : vector<64x8xf32>
    %cst_23 = arith.constant 1.000000e+00 : f32
    %58 = vector.broadcast %cst_23 : f32 to vector<64x8xf32>
    %59 = arith.addf %57, %58 : vector<64x8xf32>
    %cst_24 = arith.constant 0.000000e+00 : f32
    %60 = vector.broadcast %cst_24 : f32 to vector<64x8xf32>
    %61 = arith.subf %60, %59 : vector<64x8xf32>
    %62 = math.exp %61 : vector<64x8xf32>
    %63 = tpu.concatenate %1, %62 in 1 : vector<64x8xf32>, vector<64x8xf32> -> vector<64x16xf32>
    %64 = arith.truncf %63 : vector<64x16xf32> to vector<64x16xbf16>
    %cst_25 = arith.constant dense<0.000000e+00> : vector<64x16xf32>
    %65 = tpu.matmul %36, %64, %cst_25 {dimension_numbers = #tpu.dot_dimension_numbers<[1], [0], [0], [1], [0, 0, 1, 1], [], []>} : vector<64x64xbf16>, vector<64x16xbf16>, vector<64x16xf32> -> vector<64x16xf32>
    %cst_26 = arith.constant dense<0.000000e+00> : vector<16x16xf32>
    %66 = tpu.matmul %63, %65, %cst_26 {dimension_numbers = #tpu.dot_dimension_numbers<[0], [0], [1], [1], [0, 1, 1, 1], [], []>} : vector<64x16xf32>, vector<64x16xf32>, vector<16x16xf32> -> vector<16x16xf32>
    %67 = vector.extract_strided_slice %66 {offsets = [0, 0], sizes = [8, 8], strides = [1, 1]} : vector<16x16xf32> to vector<8x8xf32>
    %68 = tpu.iota {dimensions = array<i32: 0>} : vector<8x8xi32>
    %69 = tpu.iota {dimensions = array<i32: 1>} : vector<8x8xi32>
    %70 = arith.cmpi eq, %68, %69 : vector<8x8xi32>
    %cst_27 = arith.constant 0.000000e+00 : f32
    %71 = vector.broadcast %cst_27 : f32 to vector<8x8xf32>
    %72 = arith.select %70, %67, %71 : vector<8x8xi1>, vector<8x8xf32>
    %cst_28 = arith.constant dense<0.000000e+00> : vector<8xf32>
    %73 = vector.multi_reduction <add>, %72, %cst_28 [1] : vector<8x8xf32> to vector<8xf32>
    %74 = vector.shape_cast %73 : vector<8xf32> to vector<8x1xf32>
    %cst_29 = arith.constant dense<0.000000e+00> : vector<8x8xf32>
    %75 = tpu.matmul %74, %74, %cst_29 {dimension_numbers = #tpu.dot_dimension_numbers<[1], [1], [0], [0], [0, 0, 1, 0], [], []>} : vector<8x1xf32>, vector<8x1xf32>, vector<8x8xf32> -> vector<8x8xf32>
    %cst_30 = arith.constant 9.99999971E-10 : f32
    %76 = vector.broadcast %cst_30 : f32 to vector<8x8xf32>
    %77 = arith.maximumf %67, %76 : vector<8x8xf32>
    %cst_31 = arith.constant 1.000000e-18 : f32
    %78 = vector.broadcast %cst_31 : f32 to vector<8x8xf32>
    %79 = arith.maximumf %75, %78 : vector<8x8xf32>
    %80 = math.sqrt %79 : vector<8x8xf32>
    %81 = arith.divf %77, %80 : vector<8x8xf32>
    %cst_32 = arith.constant dense<0.000000e+00> : vector<8xf32>
    %82 = vector.multi_reduction <add>, %81, %cst_32 [1] : vector<8x8xf32> to vector<8xf32>
    %83 = vector.shape_cast %82 : vector<8xf32> to vector<8x1xf32>
    %cst_33 = arith.constant dense<0.000000e+00> : vector<1xf32>
    %84 = vector.multi_reduction <add>, %83, %cst_33 [0] : vector<8x1xf32> to vector<1xf32>
    %85 = vector.shape_cast %84 : vector<1xf32> to vector<1x1xf32>
    %cst_34 = arith.constant 0.000000e+00 : f32
    %86 = vector.broadcast %cst_34 : f32 to vector<8x8xf32>
    %87 = arith.select %70, %81, %86 : vector<8x8xi1>, vector<8x8xf32>
    %cst_35 = arith.constant dense<0.000000e+00> : vector<8xf32>
    %88 = vector.multi_reduction <add>, %87, %cst_35 [1] : vector<8x8xf32> to vector<8xf32>
    %89 = vector.shape_cast %88 : vector<8xf32> to vector<8x1xf32>
    %cst_36 = arith.constant dense<0.000000e+00> : vector<1xf32>
    %90 = vector.multi_reduction <add>, %89, %cst_36 [0] : vector<8x1xf32> to vector<1xf32>
    %91 = vector.shape_cast %90 : vector<1xf32> to vector<1x1xf32>
    %92 = arith.subf %85, %91 : vector<1x1xf32>
    %cst_37 = arith.constant 0.0178571437 : f32
    %93 = vector.broadcast %cst_37 : f32 to vector<1x1xf32>
    %94 = arith.mulf %92, %93 : vector<1x1xf32>
    %95 = vector.extract_strided_slice %66 {offsets = [8, 8], sizes = [8, 8], strides = [1, 1]} : vector<16x16xf32> to vector<8x8xf32>
    %96 = tpu.iota {dimensions = array<i32: 0>} : vector<8x8xi32>
    %97 = tpu.iota {dimensions = array<i32: 1>} : vector<8x8xi32>
    %98 = arith.cmpi eq, %96, %97 : vector<8x8xi32>
    %cst_38 = arith.constant 0.000000e+00 : f32
    %99 = vector.broadcast %cst_38 : f32 to vector<8x8xf32>
    %100 = arith.select %98, %95, %99 : vector<8x8xi1>, vector<8x8xf32>
    %cst_39 = arith.constant dense<0.000000e+00> : vector<8xf32>
    %101 = vector.multi_reduction <add>, %100, %cst_39 [1] : vector<8x8xf32> to vector<8xf32>
    %102 = vector.shape_cast %101 : vector<8xf32> to vector<8x1xf32>
    %cst_40 = arith.constant dense<0.000000e+00> : vector<8x8xf32>
    %103 = tpu.matmul %102, %102, %cst_40 {dimension_numbers = #tpu.dot_dimension_numbers<[1], [1], [0], [0], [0, 0, 1, 0], [], []>} : vector<8x1xf32>, vector<8x1xf32>, vector<8x8xf32> -> vector<8x8xf32>
    %cst_41 = arith.constant 9.99999971E-10 : f32
    %104 = vector.broadcast %cst_41 : f32 to vector<8x8xf32>
    %105 = arith.maximumf %95, %104 : vector<8x8xf32>
    %cst_42 = arith.constant 1.000000e-18 : f32
    %106 = vector.broadcast %cst_42 : f32 to vector<8x8xf32>
    %107 = arith.maximumf %103, %106 : vector<8x8xf32>
    %108 = math.sqrt %107 : vector<8x8xf32>
    %109 = arith.divf %105, %108 : vector<8x8xf32>
    %cst_43 = arith.constant dense<0.000000e+00> : vector<8xf32>
    %110 = vector.multi_reduction <add>, %109, %cst_43 [1] : vector<8x8xf32> to vector<8xf32>
    %111 = vector.shape_cast %110 : vector<8xf32> to vector<8x1xf32>
    %cst_44 = arith.constant dense<0.000000e+00> : vector<1xf32>
    %112 = vector.multi_reduction <add>, %111, %cst_44 [0] : vector<8x1xf32> to vector<1xf32>
    %113 = vector.shape_cast %112 : vector<1xf32> to vector<1x1xf32>
    %cst_45 = arith.constant 0.000000e+00 : f32
    %114 = vector.broadcast %cst_45 : f32 to vector<8x8xf32>
    %115 = arith.select %98, %109, %114 : vector<8x8xi1>, vector<8x8xf32>
    %cst_46 = arith.constant dense<0.000000e+00> : vector<8xf32>
    %116 = vector.multi_reduction <add>, %115, %cst_46 [1] : vector<8x8xf32> to vector<8xf32>
    %117 = vector.shape_cast %116 : vector<8xf32> to vector<8x1xf32>
    %cst_47 = arith.constant dense<0.000000e+00> : vector<1xf32>
    %118 = vector.multi_reduction <add>, %117, %cst_47 [0] : vector<8x1xf32> to vector<1xf32>
    %119 = vector.shape_cast %118 : vector<1xf32> to vector<1x1xf32>
    %120 = arith.subf %113, %119 : vector<1x1xf32>
    %cst_48 = arith.constant 0.0178571437 : f32
    %121 = vector.broadcast %cst_48 : f32 to vector<1x1xf32>
    %122 = arith.mulf %120, %121 : vector<1x1xf32>
    %123 = tpu.iota {dimensions = array<i32: 1>} : vector<1x128xi32>
    %c0_i32_49 = arith.constant 0 : i32
    %124 = vector.broadcast %c0_i32_49 : i32 to vector<1x128xi32>
    %125 = arith.cmpi eq, %123, %124 : vector<1x128xi32>
    %cst_50 = arith.constant 0.000000e+00 : f32
    %126 = vector.shape_cast %94 : vector<1x1xf32> to vector<1x1xf32>
    %127 = vector.broadcast %126 : vector<1x1xf32> to vector<1x128xf32>
    %128 = vector.broadcast %cst_50 : f32 to vector<1x128xf32>
    %129 = arith.select %125, %127, %128 : vector<1x128xi1>, vector<1x128xf32>
    %c1_i32_51 = arith.constant 1 : i32
    %130 = vector.broadcast %c1_i32_51 : i32 to vector<1x128xi32>
    %131 = arith.cmpi eq, %123, %130 : vector<1x128xi32>
    %cst_52 = arith.constant 0.000000e+00 : f32
    %132 = vector.shape_cast %53 : vector<1x1xf32> to vector<1x1xf32>
    %133 = vector.broadcast %132 : vector<1x1xf32> to vector<1x128xf32>
    %134 = vector.broadcast %cst_52 : f32 to vector<1x128xf32>
    %135 = arith.select %131, %133, %134 : vector<1x128xi1>, vector<1x128xf32>
    %136 = arith.addf %129, %135 : vector<1x128xf32>
    %c2_i32 = arith.constant 2 : i32
    %137 = vector.broadcast %c2_i32 : i32 to vector<1x128xi32>
    %138 = arith.cmpi eq, %123, %137 : vector<1x128xi32>
    %cst_53 = arith.constant 0.000000e+00 : f32
    %139 = vector.shape_cast %122 : vector<1x1xf32> to vector<1x1xf32>
    %140 = vector.broadcast %139 : vector<1x1xf32> to vector<1x128xf32>
    %141 = vector.broadcast %cst_53 : f32 to vector<1x128xf32>
    %142 = arith.select %138, %140, %141 : vector<1x128xi1>, vector<1x128xf32>
    %143 = arith.addf %136, %142 : vector<1x128xf32>
    %c0_54 = arith.constant 0 : index
    %c0_55 = arith.constant 0 : index
    %144 = vector.load %arg3[%c0_54, %c0_55] : memref<1x128xf32, #tpu.memory_space<vmem>>, vector<1x128xf32>
    tpu.vector_store %arg3[%c0_54, %c0_55], %143 {strides = array<i32>} : memref<1x128xf32, #tpu.memory_space<vmem>>, vector<1x128xf32>,
    return
  }
  func.func @transform_0(%arg0: i32) -> (i32, i32) {
    %c0_i32 = arith.constant 0 : i32
    %c0_i32_0 = arith.constant 0 : i32
    %c0_i32_1 = arith.constant 0 : i32
    return %c0_i32, %c0_i32_0 : i32, i32
  }
  func.func @transform_1(%arg0: i32) -> (i32, i32) {
    %c0_i32 = arith.constant 0 : i32
    %c0_i32_0 = arith.constant 0 : i32
    %c0_i32_1 = arith.constant 0 : i32
    return %c0_i32, %c0_i32_0 : i32, i32
  }
  func.func @transform_2(%arg0: i32) -> (i32, i32) {
    %c0_i32 = arith.constant 0 : i32
    %c0_i32_0 = arith.constant 0 : i32
    %c0_i32_1 = arith.constant 0 : i32
    return %c0_i32, %c0_i32_0 : i32, i32
  }
}

</mosaic_0001>

<llo_original>
// kernel: loss_forward.1
$region0: #{loss_forward.1}
  #allocation0 [shape = 'u32[]', space=smem, size = 0x4, offset = 0x4, fixed_abs, tag = 'smem constant byte address 0x4 - core index']
  #allocation1 [shape = 'u32[144,128]{1,0:T(1,128)}', space=vmem, size = 0x12000, scoped, tag = 'internal scratch']
  %s0 = inlined_call_operand.vmem [shape: f32[64,32], index: 0, kind: input, shape index: {}]
  %s1 = inlined_call_operand.vmem [shape: f32[64,8], index: 1, kind: input, shape index: {}]
  %s2 = inlined_call_operand.vmem [shape: f32[1,128], index: 2, kind: output, shape index: {}]
  %s3 = sld [smem:[#allocation0]]
  $region25: #{loss_forward.1} parent=0
    _
  %s5 = ssub.s32 1, %s3
  %s6 = scalar_select 0, %s5, %s3
  // Predicated region
  $region2: #{loss_forward.1} parent=0 // pred_check
    _
  $region3: #{loss_forward.1} parent=0 // pred_check_branch
    %8 = sbr.rel (0) target = $region5
  $region4: #{loss_forward.1} parent=0 // pred_region
    _
  $region5: #{loss_forward.1} parent=0 // pred_fallthru
    _
  // Predicated region
  $region6: #{loss_forward.1} parent=0 // pred_check
    _
  $region7: #{loss_forward.1} parent=0 // pred_check_branch
    %10 = sbr.rel (0) target = $region9
  $region8: #{loss_forward.1} parent=0 // pred_region
    _
  $region9: #{loss_forward.1} parent=0 // pred_fallthru
    _
  %v12 = vld [vmem:[%s0] sm:$0xff]
  %v13 = vld [vmem:[%s0 + $0x8] sm:$0xff]
  %v14 = vld [vmem:[%s0 + $0x10] sm:$0xff]
  %v15 = vld [vmem:[%s0 + $0x18] sm:$0xff]
  %v16 = vld [vmem:[%s0 + $0x20] sm:$0xff]
  %v17 = vld [vmem:[%s0 + $0x28] sm:$0xff]
  %v18 = vld [vmem:[%s0 + $0x30] sm:$0xff]
  %v19 = vld [vmem:[%s0 + $0x38] sm:$0xff]
  %v20 = vld [vmem:[%s1] sm:$0xff]
  %v21 = vld [vmem:[%s1 + $0x8] sm:$0xff]
  %v22 = vld [vmem:[%s1 + $0x10] sm:$0xff]
  %v23 = vld [vmem:[%s1 + $0x18] sm:$0xff]
  %v24 = vld [vmem:[%s1 + $0x20] sm:$0xff]
  %v25 = vld [vmem:[%s1 + $0x28] sm:$0xff]
  %v26 = vld [vmem:[%s1 + $0x30] sm:$0xff]
  %v27 = vld [vmem:[%s1 + $0x38] sm:$0xff]
  %v28 = vmul.f32 %v12, %v12
  %v29 = vmul.f32 %v13, %v13
  %v30 = vmul.f32 %v14, %v14
  %v31 = vmul.f32 %v15, %v15
  %v32 = vmul.f32 %v16, %v16
  %v33 = vmul.f32 %v17, %v17
  %v34 = vmul.f32 %v18, %v18
  %v35 = vmul.f32 %v19, %v19
  %vm36 = vcmask 261120
  %v37 = vsel %vm36, %v28, 0.0
  %38 = vadd.xlane.f32.xlu0 %v37
  %v39 = vpop.xlane.xlu0 %38
  %v40 = vsel %vm36, %v29, 0.0
  %41 = vadd.xlane.f32.xlu0 %v40
  %v42 = vpop.xlane.xlu0 %41
  %v43 = vsel %vm36, %v30, 0.0
  %44 = vadd.xlane.f32.xlu0 %v43
  %v45 = vpop.xlane.xlu0 %44
  %v46 = vsel %vm36, %v31, 0.0
  %47 = vadd.xlane.f32.xlu0 %v46
  %v48 = vpop.xlane.xlu0 %47
  %v49 = vsel %vm36, %v32, 0.0
  %50 = vadd.xlane.f32.xlu0 %v49
  %v51 = vpop.xlane.xlu0 %50
  %v52 = vsel %vm36, %v33, 0.0
  %53 = vadd.xlane.f32.xlu0 %v52
  %v54 = vpop.xlane.xlu0 %53
  %v55 = vsel %vm36, %v34, 0.0
  %56 = vadd.xlane.f32.xlu0 %v55
  %v57 = vpop.xlane.xlu0 %56
  %v58 = vsel %vm36, %v35, 0.0
  %59 = vadd.xlane.f32.xlu0 %v58
  %v60 = vpop.xlane.xlu0 %59
  %v61 = vmul.f32 %v12, -1.4142135
  %v62 = vmul.f32 %v13, -1.4142135
  %v63 = vmul.f32 %v14, -1.4142135
  %v64 = vmul.f32 %v15, -1.4142135
  %v65 = vmul.f32 %v16, -1.4142135
  %v66 = vmul.f32 %v17, -1.4142135
  %v67 = vmul.f32 %v18, -1.4142135
  %v68 = vmul.f32 %v19, -1.4142135
  %v69 = vsel %vm36, %v61, 1.0
  %v70 = vsel %vm36, %v62, 1.0
  %v71 = vsel %vm36, %v63, 1.0
  %v72 = vsel %vm36, %v64, 1.0
  %v73 = vsel %vm36, %v65, 1.0
  %v74 = vsel %vm36, %v66, 1.0
  %v75 = vsel %vm36, %v67, 1.0
  %v76 = vsel %vm36, %v68, 1.0
  %vm77 = vcmask 269312
  %v78 = vsel %vm77, %v69, %v39
  %v79 = vsel %vm77, %v70, %v42
  %v80 = vsel %vm77, %v71, %v45
  %v81 = vsel %vm77, %v72, %v48
  %v82 = vsel %vm77, %v73, %v51
  %v83 = vsel %vm77, %v74, %v54
  %v84 = vsel %vm77, %v75, %v57
  %v85 = vsel %vm77, %v76, %v60
  %v86 = vmul.f32 %v12, 1.4142135
  %v87 = vmul.f32 %v13, 1.4142135
  %v88 = vmul.f32 %v14, 1.4142135
  %v89 = vmul.f32 %v15, 1.4142135
  %v90 = vmul.f32 %v16, 1.4142135
  %v91 = vmul.f32 %v17, 1.4142135
  %v92 = vmul.f32 %v18, 1.4142135
  %v93 = vmul.f32 %v19, 1.4142135
  %v94 = vsel %vm36, %v86, %v39
  %v95 = vsel %vm36, %v87, %v42
  %v96 = vsel %vm36, %v88, %v45
  %v97 = vsel %vm36, %v89, %v48
  %v98 = vsel %vm36, %v90, %v51
  %v99 = vsel %vm36, %v91, %v54
  %v100 = vsel %vm36, %v92, %v57
  %v101 = vsel %vm36, %v93, %v60
  %v102 = vsel %vm77, %v94, 1.0
  %v103 = vsel %vm77, %v95, 1.0
  %v104 = vsel %vm77, %v96, 1.0
  %v105 = vsel %vm77, %v97, 1.0
  %v106 = vsel %vm77, %v98, 1.0
  %v107 = vsel %vm77, %v99, 1.0
  %v108 = vsel %vm77, %v100, 1.0
  %v109 = vsel %vm77, %v101, 1.0
  %vm110 = vcmask 277504
  %v112 = vsel %vm110, %v78, 0
  %v115 = vsel %vm110, %v79, 0
  %v118 = vsel %vm110, %v80, 0
  %v121 = vsel %vm110, %v81, 0
  %v124 = vsel %vm110, %v82, 0
  %v127 = vsel %vm110, %v83, 0
  %v130 = vsel %vm110, %v84, 0
  %v133 = vsel %vm110, %v85, 0
  %v136 = vsel %vm110, %v102, 0
  %v139 = vsel %vm110, %v103, 0
  %v142 = vsel %vm110, %v104, 0
  %v145 = vsel %vm110, %v105, 0
  %v148 = vsel %vm110, %v106, 0
  %v151 = vsel %vm110, %v107, 0
  %v154 = vsel %vm110, %v108, 0
  %v157 = vsel %vm110, %v109, 0
  %159 = vmatprep.subr.mxu0 0.0
  %160 = vmatpush1.xpose.msra.mxu0 %v136
  %161 = vmatprep.subr.mxu0 0.0
  %162 = vmatpush1.xpose.msra.mxu0 %v139
  %163 = vmatprep.subr.mxu0 0.0
  %164 = vmatpush1.xpose.msra.mxu0 %v142
  %165 = vmatprep.subr.mxu0 0.0
  %166 = vmatpush1.xpose.msra.mxu0 %v145
  %167 = vmatprep.subr.mxu0 0.0
  %168 = vmatpush1.xpose.msra.mxu0 %v148
  %169 = vmatprep.subr.mxu0 0.0
  %170 = vmatpush1.xpose.msra.mxu0 %v151
  %171 = vmatprep.subr.mxu0 0.0
  %172 = vmatpush1.xpose.msra.mxu0 %v154
  %173 = vmatprep.subr.mxu0 0.0
  %174 = vmatpush1.xpose.msra.mxu0 %v157
  %175 = vmatprep.subr.mxu0 0.0
  %176 = vmatpush1.xpose.msra.mxu0 0.0
  %177 = vmatprep.subr.mxu0 0.0
  %178 = vmatpush1.xpose.msra.mxu0 0.0
  %179 = vmatprep.subr.mxu0 0.0
  %180 = vmatpush1.xpose.msra.mxu0 0.0
  %181 = vmatprep.subr.mxu0 0.0
  %182 = vmatpush1.xpose.msra.mxu0 0.0
  %183 = vmatprep.subr.mxu0 0.0
  %184 = vmatpush1.xpose.msra.mxu0 0.0
  %185 = vmatprep.subr.mxu0 0.0
  %186 = vmatpush1.xpose.msra.mxu0 0.0
  %187 = vmatprep.subr.mxu0 0.0
  %188 = vmatpush1.xpose.msra.mxu0 0.0
  %189 = vmatprep.subr.mxu0 0.0
  %190 = vmatpush1.xpose.msra.mxu0 0.0
  %191 = vmatprep.subr.mxu0 0.0
  %192 = vmatpush1.xpose.msra.mxu0 0.0
  %193 = vmatprep.subr.mxu0 0.0
  %194 = vmatpush1.xpose.msra.mxu0 0.0
  %195 = vmatprep.subr.mxu0 0.0
  %196 = vmatpush1.xpose.msra.mxu0 0.0
  %197 = vmatprep.subr.mxu0 0.0
  %198 = vmatpush1.xpose.msra.mxu0 0.0
  %199 = vmatprep.subr.mxu0 0.0
  %200 = vmatpush1.xpose.msra.mxu0 0.0
  %201 = vmatprep.subr.mxu0 0.0
  %202 = vmatpush1.xpose.msra.mxu0 0.0
  %203 = vmatprep.subr.mxu0 0.0
  %204 = vmatpush1.xpose.msra.mxu0 0.0
  %205 = vmatprep.subr.mxu0 0.0
  %206 = vmatpush1.xpose.msra.mxu0 0.0
  %207 = vmatprep.subr.mxu0 0.0
  %208 = vmatpush1.xpose.msra.mxu0 0.0
  %209 = vmatprep.subr.mxu0 0.0
  %210 = vmatpush1.xpose.msra.mxu0 0.0
  %211 = vmatprep.subr.mxu0 0.0
  %212 = vmatpush1.xpose.msra.mxu0 0.0
  %213 = vmatprep.subr.mxu0 0.0
  %214 = vmatpush1.xpose.msra.mxu0 0.0
  %215 = vmatprep.subr.mxu0 0.0
  %216 = vmatpush1.xpose.msra.mxu0 0.0
  %217 = vmatprep.subr.mxu0 0.0
  %218 = vmatpush1.xpose.msra.mxu0 0.0
  %219 = vmatprep.subr.mxu0 0.0
  %220 = vmatpush1.xpose.msra.mxu0 0.0
  %221 = vmatprep.subr.mxu0 0.0
  %222 = vmatpush1.xpose.msra.mxu0 0.0
  %223 = vmatprep.mubr.f32.mxu0 0.0
  %224 = vmatmul.mubr.f32.gmra.mrb[0].mxu0 %v112
  %v225 = vpop.f32.mrb[0].mxu0
  %v226 = vadd.f32 0.0, %v225
  %v227 = vpop.f32.mrb[0].mxu0
  %228 = vmatprep.mubr.f32.mxu0 0.0
  %229 = vmatmul.mubr.f32.gmra.mrb[0].mxu0 %v115
  %v230 = vpop.f32.mrb[0].mxu0
  %v231 = vadd.f32 0.0, %v230
  %v232 = vpop.f32.mrb[0].mxu0
  %233 = vmatprep.mubr.f32.mxu0 0.0
  %234 = vmatmul.mubr.f32.gmra.mrb[0].mxu0 %v118
  %v235 = vpop.f32.mrb[0].mxu0
  %v236 = vadd.f32 0.0, %v235
  %v237 = vpop.f32.mrb[0].mxu0
  %238 = vmatprep.mubr.f32.mxu0 0.0
  %239 = vmatmul.mubr.f32.gmra.mrb[0].mxu0 %v121
  %v240 = vpop.f32.mrb[0].mxu0
  %v241 = vadd.f32 0.0, %v240
  %v242 = vpop.f32.mrb[0].mxu0
  %243 = vmatprep.mubr.f32.mxu0 0.0
  %244 = vmatmul.mubr.f32.gmra.mrb[0].mxu0 %v124
  %v245 = vpop.f32.mrb[0].mxu0
  %v246 = vadd.f32 0.0, %v245
  %v247 = vpop.f32.mrb[0].mxu0
  %248 = vmatprep.mubr.f32.mxu0 0.0
  %249 = vmatmul.mubr.f32.gmra.mrb[0].mxu0 %v127
  %v250 = vpop.f32.mrb[0].mxu0
  %v251 = vadd.f32 0.0, %v250
  %v252 = vpop.f32.mrb[0].mxu0
  %253 = vmatprep.mubr.f32.mxu0 0.0
  %254 = vmatmul.mubr.f32.gmra.mrb[0].mxu0 %v130
  %v255 = vpop.f32.mrb[0].mxu0
  %v256 = vadd.f32 0.0, %v255
  %v257 = vpop.f32.mrb[0].mxu0
  %258 = vmatprep.mubr.f32.mxu0 0.0
  %259 = vmatmul.mubr.f32.gmra.mrb[0].mxu0 %v133
  %v260 = vpop.f32.mrb[0].mxu0
  %v261 = vadd.f32 0.0, %v260
  %v262 = vpop.f32.mrb[0].mxu0
  %263 = vdwg.mxu0
  %v264 = vmax.f32 %v226, 0.0
  %v265 = vmax.f32 %v231, 0.0
  %v266 = vmax.f32 %v236, 0.0
  %v267 = vmax.f32 %v241, 0.0
  %v268 = vmax.f32 %v246, 0.0
  %v269 = vmax.f32 %v251, 0.0
  %v270 = vmax.f32 %v256, 0.0
  %v271 = vmax.f32 %v261, 0.0
  %vm272 = vcmask 523264
  %v273 = vsel %vm272, %v264, -inf
  %274 = vmax.xlane.f32.xlu0 %v273
  %v275 = vpop.xlane.xlu0 %274
  %v276 = vsel %vm272, %v265, -inf
  %277 = vmax.xlane.f32.xlu0 %v276
  %v278 = vpop.xlane.xlu0 %277
  %v279 = vsel %vm272, %v266, -inf
  %280 = vmax.xlane.f32.xlu0 %v279
  %v281 = vpop.xlane.xlu0 %280
  %v282 = vsel %vm272, %v267, -inf
  %283 = vmax.xlane.f32.xlu0 %v282
  %v284 = vpop.xlane.xlu0 %283
  %v285 = vsel %vm272, %v268, -inf
  %286 = vmax.xlane.f32.xlu0 %v285
  %v287 = vpop.xlane.xlu0 %286
  %v288 = vsel %vm272, %v269, -inf
  %289 = vmax.xlane.f32.xlu0 %v288
  %v290 = vpop.xlane.xlu0 %289
  %v291 = vsel %vm272, %v270, -inf
  %292 = vmax.xlane.f32.xlu0 %v291
  %v293 = vpop.xlane.xlu0 %292
  %v294 = vsel %vm272, %v271, -inf
  %295 = vmax.xlane.f32.xlu0 %v294
  %v296 = vpop.xlane.xlu0 %295
  %v297 = vmax.f32 %v275, %v287
  %v298 = vmax.f32 %v278, %v290
  %v299 = vmax.f32 %v281, %v293
  %v300 = vmax.f32 %v284, %v296
  %v301 = vmax.f32 %v297, %v298
  %v302 = vmax.f32 %v299, %v300
  %v303 = vmax.f32 %v301, %v302
  %v304 = vrot.slane %v303, 4
  %v305 = vmax.f32 %v303, %v304
  %v306 = vrot.slane %v305, 2
  %v307 = vmax.f32 %v305, %v306
  %v308 = vrot.slane %v307, 1
  %v309 = vmax.f32 %v307, %v308
  %vm311 = vcmp.gt.s32.totalorder %v309, 0
  %v312 = vsel %vm311, %v309, 0
  loop: start=0, step=1, limit=16
  $region10: #{loss_forward.1} parent=0 // loop_pre_header
    _
  $region11: #{loss_forward.1} parent=0 // loop_header
    %s314 = sphi 0, %s318
    %p315 = scmp.ge.s32.totalorder %s314, 16
    %v319 = vphi 0, %v460
    %v320 = vphi %v312, %v461
  $region12: #{loss_forward.1} parent=0 // loop_header_branch
    %317 = sbr.rel (%p315) target = $region16
  $region13: #{loss_forward.1} parent=0 // loop_body
    %v321 = vsub.s32 %v320, %v319
    %v322 = vshra.s32 %v321, 1
    %v323 = vadd.s32 %v319, %v322
    %vm325 = vcmp.le.f32.partialorder %v264, %v323
    %vm326 = vcmp.le.f32.partialorder %v265, %v323
    %vm327 = vcmp.le.f32.partialorder %v266, %v323
    %vm328 = vcmp.le.f32.partialorder %v267, %v323
    %vm329 = vcmp.le.f32.partialorder %v268, %v323
    %vm330 = vcmp.le.f32.partialorder %v269, %v323
    %vm331 = vcmp.le.f32.partialorder %v270, %v323
    %vm332 = vcmp.le.f32.partialorder %v271, %v323
    %v333 = vsel %vm325, 1, 0
    %v334 = vsel %vm326, 1, 0
    %v335 = vsel %vm327, 1, 0
    %v336 = vsel %vm328, 1, 0
    %v337 = vsel %vm329, 1, 0
    %v338 = vsel %vm330, 1, 0
    %v339 = vsel %vm331, 1, 0
    %v340 = vsel %vm332, 1, 0
    %v341 = vsel %vm272, %v333, 0
    %v342 = vand.u32 %v341, 65535
    %v343 = vshrl.u32 %v341, 16
    %v344 = vcvt.s32.f32 %v342
    %v345 = vcvt.s32.f32 %v343
    %346 = vadd.xlane.f32.xlu0 %v344
    %v347 = vpop.xlane.xlu0 %346
    %348 = vadd.xlane.f32.xlu0 %v345
    %v349 = vpop.xlane.xlu0 %348
    %v350 = vcvt.f32.s32 %v347
    %v351 = vcvt.f32.s32 %v349
    %v352 = vshll.u32 %v351, 16
    %v353 = vadd.s32 %v352, %v350
    %v354 = vsel %vm272, %v334, 0
    %v355 = vand.u32 %v354, 65535
    %v356 = vshrl.u32 %v354, 16
    %v357 = vcvt.s32.f32 %v355
    %v358 = vcvt.s32.f32 %v356
    %359 = vadd.xlane.f32.xlu0 %v357
    %v360 = vpop.xlane.xlu0 %359
    %361 = vadd.xlane.f32.xlu0 %v358
    %v362 = vpop.xlane.xlu0 %361
    %v363 = vcvt.f32.s32 %v360
    %v364 = vcvt.f32.s32 %v362
    %v365 = vshll.u32 %v364, 16
    %v366 = vadd.s32 %v365, %v363
    %v367 = vsel %vm272, %v335, 0
    %v368 = vand.u32 %v367, 65535
    %v369 = vshrl.u32 %v367, 16
    %v370 = vcvt.s32.f32 %v368
    %v371 = vcvt.s32.f32 %v369
    %372 = vadd.xlane.f32.xlu0 %v370
    %v373 = vpop.xlane.xlu0 %372
    %374 = vadd.xlane.f32.xlu0 %v371
    %v375 = vpop.xlane.xlu0 %374
    %v376 = vcvt.f32.s32 %v373
    %v377 = vcvt.f32.s32 %v375
    %v378 = vshll.u32 %v377, 16
    %v379 = vadd.s32 %v378, %v376
    %v380 = vsel %vm272, %v336, 0
    %v381 = vand.u32 %v380, 65535
    %v382 = vshrl.u32 %v380, 16
    %v383 = vcvt.s32.f32 %v381
    %v384 = vcvt.s32.f32 %v382
    %385 = vadd.xlane.f32.xlu0 %v383
    %v386 = vpop.xlane.xlu0 %385
    %387 = vadd.xlane.f32.xlu0 %v384
    %v388 = vpop.xlane.xlu0 %387
    %v389 = vcvt.f32.s32 %v386
    %v390 = vcvt.f32.s32 %v388
    %v391 = vshll.u32 %v390, 16
    %v392 = vadd.s32 %v391, %v389
    %v393 = vsel %vm272, %v337, 0
    %v394 = vand.u32 %v393, 65535
    %v395 = vshrl.u32 %v393, 16
    %v396 = vcvt.s32.f32 %v394
    %v397 = vcvt.s32.f32 %v395
    %398 = vadd.xlane.f32.xlu0 %v396
    %v399 = vpop.xlane.xlu0 %398
    %400 = vadd.xlane.f32.xlu0 %v397
    %v401 = vpop.xlane.xlu0 %400
    %v402 = vcvt.f32.s32 %v399
    %v403 = vcvt.f32.s32 %v401
    %v404 = vshll.u32 %v403, 16
    %v405 = vadd.s32 %v404, %v402
    %v406 = vsel %vm272, %v338, 0
    %v407 = vand.u32 %v406, 65535
    %v408 = vshrl.u32 %v406, 16
    %v409 = vcvt.s32.f32 %v407
    %v410 = vcvt.s32.f32 %v408
    %411 = vadd.xlane.f32.xlu0 %v409
    %v412 = vpop.xlane.xlu0 %411
    %413 = vadd.xlane.f32.xlu0 %v410
    %v414 = vpop.xlane.xlu0 %413
    %v415 = vcvt.f32.s32 %v412
    %v416 = vcvt.f32.s32 %v414
    %v417 = vshll.u32 %v416, 16
    %v418 = vadd.s32 %v417, %v415
    %v419 = vsel %vm272, %v339, 0
    %v420 = vand.u32 %v419, 65535
    %v421 = vshrl.u32 %v419, 16
    %v422 = vcvt.s32.f32 %v420
    %v423 = vcvt.s32.f32 %v421
    %424 = vadd.xlane.f32.xlu0 %v422
    %v425 = vpop.xlane.xlu0 %424
    %426 = vadd.xlane.f32.xlu0 %v423
    %v427 = vpop.xlane.xlu0 %426
    %v428 = vcvt.f32.s32 %v425
    %v429 = vcvt.f32.s32 %v427
    %v430 = vshll.u32 %v429, 16
    %v431 = vadd.s32 %v430, %v428
    %v432 = vsel %vm272, %v340, 0
    %v433 = vand.u32 %v432, 65535
    %v434 = vshrl.u32 %v432, 16
    %v435 = vcvt.s32.f32 %v433
    %v436 = vcvt.s32.f32 %v434
    %437 = vadd.xlane.f32.xlu0 %v435
    %v438 = vpop.xlane.xlu0 %437
    %439 = vadd.xlane.f32.xlu0 %v436
    %v440 = vpop.xlane.xlu0 %439
    %v441 = vcvt.f32.s32 %v438
    %v442 = vcvt.f32.s32 %v440
    %v443 = vshll.u32 %v442, 16
    %v444 = vadd.s32 %v443, %v441
    %v445 = vadd.s32 %v353, %v405
    %v446 = vadd.s32 %v366, %v418
    %v447 = vadd.s32 %v379, %v431
    %v448 = vadd.s32 %v392, %v444
    %v449 = vadd.s32 %v445, %v446
    %v450 = vadd.s32 %v447, %v448
    %v451 = vadd.s32 %v449, %v450
    %v452 = vrot.slane %v451, 4
    %v453 = vadd.s32 %v451, %v452
    %v454 = vrot.slane %v453, 2
    %v455 = vadd.s32 %v453, %v454
    %v456 = vrot.slane %v455, 1
    %v457 = vadd.s32 %v455, %v456
    %vm458 = vcmp.ge.s32.totalorder %v457, 2048
    %v459 = vadd.s32 %v323, 1
    %v460 = vsel %vm458, %v319, %v459
    %v461 = vsel %vm458, %v323, %v320
  $region14: #{loss_forward.1} parent=0 // loop_footer
    %s318 = sadd.s32 1, %s314
  $region15: #{loss_forward.1} parent=0 // loop_footer_branch
    %313 = sbr.rel target = $region11
  $region16: #{loss_forward.1} parent=0 // loop_exit
    _
  %v463 = vmul.f32 %v319, 0.15
  %v464 = vmax.f32 %v463, 1e-09
  %v465 = vrcp.pop %v464
  %v466 = vmul.f32 -0.5, %v465
  %v467 = vmul.f32 %v264, %v466
  %v468 = vmul.f32 %v265, %v466
  %v469 = vmul.f32 %v266, %v466
  %v470 = vmul.f32 %v267, %v466
  %v471 = vmul.f32 %v268, %v466
  %v472 = vmul.f32 %v269, %v466
  %v473 = vmul.f32 %v270, %v466
  %v474 = vmul.f32 %v271, %v466
  %v475 = vmul.f32 %v467, 1.442695
  %v476 = vpow.pop %v475
  %v477 = vmul.f32 %v468, 1.442695
  %v478 = vpow.pop %v477
  %v479 = vmul.f32 %v469, 1.442695
  %v480 = vpow.pop %v479
  %v481 = vmul.f32 %v470, 1.442695
  %v482 = vpow.pop %v481
  %v483 = vmul.f32 %v471, 1.442695
  %v484 = vpow.pop %v483
  %v485 = vmul.f32 %v472, 1.442695
  %v486 = vpow.pop %v485
  %v487 = vmul.f32 %v473, 1.442695
  %v488 = vpow.pop %v487
  %v489 = vmul.f32 %v474, 1.442695
  %v490 = vpow.pop %v489
  %v491 = vpack.c.bf16 %v478, %v476
  %v492 = vpack.c.bf16 %v482, %v480
  %v493 = vpack.c.bf16 %v486, %v484
  %v494 = vpack.c.bf16 %v490, %v488
  %v495 = vmul.f32 %v20, %v20
  %v496 = vmul.f32 %v21, %v21
  %v497 = vmul.f32 %v22, %v22
  %v498 = vmul.f32 %v23, %v23
  %v499 = vmul.f32 %v24, %v24
  %v500 = vmul.f32 %v25, %v25
  %v501 = vmul.f32 %v26, %v26
  %v502 = vmul.f32 %v27, %v27
  %vm503 = vcmask 64512
  %v504 = vsel %vm503, %v495, 0.0
  %505 = vadd.xlane.f32.xlu0 %v504
  %v506 = vpop.xlane.xlu0 %505
  %v507 = vsel %vm503, %v496, 0.0
  %508 = vadd.xlane.f32.xlu0 %v507
  %v509 = vpop.xlane.xlu0 %508
  %v510 = vsel %vm503, %v497, 0.0
  %511 = vadd.xlane.f32.xlu0 %v510
  %v512 = vpop.xlane.xlu0 %511
  %v513 = vsel %vm503, %v498, 0.0
  %514 = vadd.xlane.f32.xlu0 %v513
  %v515 = vpop.xlane.xlu0 %514
  %v516 = vsel %vm503, %v499, 0.0
  %517 = vadd.xlane.f32.xlu0 %v516
  %v518 = vpop.xlane.xlu0 %517
  %v519 = vsel %vm503, %v500, 0.0
  %520 = vadd.xlane.f32.xlu0 %v519
  %v521 = vpop.xlane.xlu0 %520
  %v522 = vsel %vm503, %v501, 0.0
  %523 = vadd.xlane.f32.xlu0 %v522
  %v524 = vpop.xlane.xlu0 %523
  %v525 = vsel %vm503, %v502, 0.0
  %526 = vadd.xlane.f32.xlu0 %v525
  %v527 = vpop.xlane.xlu0 %526
  %v528 = vadd.f32 %v506, 0.0
  %v529 = vadd.f32 %v509, 0.0
  %v530 = vadd.f32 %v512, 0.0
  %v531 = vadd.f32 %v515, 0.0
  %v532 = vadd.f32 %v518, 0.0
  %v533 = vadd.f32 %v521, 0.0
  %v534 = vadd.f32 %v524, 0.0
  %v535 = vadd.f32 %v527, 0.0
  %v536 = vadd.f32 %v528, %v529
  %v537 = vadd.f32 %v536, %v530
  %v538 = vadd.f32 %v537, %v531
  %v539 = vadd.f32 %v538, %v532
  %v540 = vadd.f32 %v539, %v533
  %v541 = vadd.f32 %v540, %v534
  %v542 = vadd.f32 %v541, %v535
  %v543 = vrot.slane %v542, 4
  %v544 = vadd.f32 %v542, %v543
  %v545 = vrot.slane %v544, 2
  %v546 = vadd.f32 %v544, %v545
  %v547 = vrot.slane %v546, 1
  %v548 = vadd.f32 %v546, %v547
  %v549 = vsel %vm503, %v20, 0.0
  %v550 = vsel %vm503, %v21, 0.0
  %v551 = vadd.f32 %v549, %v550
  %v552 = vsel %vm503, %v22, 0.0
  %v553 = vadd.f32 %v551, %v552
  %v554 = vsel %vm503, %v23, 0.0
  %v555 = vadd.f32 %v553, %v554
  %v556 = vsel %vm503, %v24, 0.0
  %v557 = vadd.f32 %v555, %v556
  %v558 = vsel %vm503, %v25, 0.0
  %v559 = vadd.f32 %v557, %v558
  %v560 = vsel %vm503, %v26, 0.0
  %v561 = vadd.f32 %v559, %v560
  %v562 = vsel %vm503, %v27, 0.0
  %v563 = vadd.f32 %v561, %v562
  %v564 = vrot.slane %v563, 4
  %v565 = vadd.f32 %v563, %v564
  %v566 = vrot.slane %v565, 2
  %v567 = vadd.f32 %v565, %v566
  %v568 = vrot.slane %v567, 1
  %v569 = vadd.f32 %v567, %v568
  %v570 = vmul.f32 %v569, %v569
  %v571 = vsel %vm503, %v570, 0.0
  %572 = vadd.xlane.f32.xlu0 %v571
  %v573 = vpop.xlane.xlu0 %572
  %v574 = vadd.f32 %v573, 0.0
  %v575 = vsub.f32 %v574, %v548
  %v576 = vmul.f32 %v575, 0.0002480159
  %v577 = vmul.f32 %v20, 2.0
  %v578 = vmul.f32 %v21, 2.0
  %v579 = vmul.f32 %v22, 2.0
  %v580 = vmul.f32 %v23, 2.0
  %v581 = vmul.f32 %v24, 2.0
  %v582 = vmul.f32 %v25, 2.0
  %v583 = vmul.f32 %v26, 2.0
  %v584 = vmul.f32 %v27, 2.0
  %v585 = vsub.f32 %v506, %v577
  %v586 = vsub.f32 %v509, %v578
  %v587 = vsub.f32 %v512, %v579
  %v588 = vsub.f32 %v515, %v580
  %v589 = vsub.f32 %v518, %v581
  %v590 = vsub.f32 %v521, %v582
  %v591 = vsub.f32 %v524, %v583
  %v592 = vsub.f32 %v527, %v584
  %v593 = vadd.f32 %v585, 1.0
  %v594 = vadd.f32 %v586, 1.0
  %v595 = vadd.f32 %v587, 1.0
  %v596 = vadd.f32 %v588, 1.0
  %v597 = vadd.f32 %v589, 1.0
  %v598 = vadd.f32 %v590, 1.0
  %v599 = vadd.f32 %v591, 1.0
  %v600 = vadd.f32 %v592, 1.0
  %v601 = vsub.f32 0.0, %v593
  %v602 = vsub.f32 0.0, %v594
  %v603 = vsub.f32 0.0, %v595
  %v604 = vsub.f32 0.0, %v596
  %v605 = vsub.f32 0.0, %v597
  %v606 = vsub.f32 0.0, %v598
  %v607 = vsub.f32 0.0, %v599
  %v608 = vsub.f32 0.0, %v600
  %v609 = vmul.f32 %v601, 1.442695
  %v610 = vpow.pop %v609
  %v611 = vmul.f32 %v602, 1.442695
  %v612 = vpow.pop %v611
  %v613 = vmul.f32 %v603, 1.442695
  %v614 = vpow.pop %v613
  %v615 = vmul.f32 %v604, 1.442695
  %v616 = vpow.pop %v615
  %v617 = vmul.f32 %v605, 1.442695
  %v618 = vpow.pop %v617
  %v619 = vmul.f32 %v606, 1.442695
  %v620 = vpow.pop %v619
  %v621 = vmul.f32 %v607, 1.442695
  %v622 = vpow.pop %v621
  %v623 = vmul.f32 %v608, 1.442695
  %v624 = vpow.pop %v623
  %633 = vrot.lane.b32.xlu0 %v610, 8
  %v634 = vpop.permute.xlu0 %633
  %635 = vrot.lane.b32.xlu0 %v612, 8
  %v636 = vpop.permute.xlu0 %635
  %637 = vrot.lane.b32.xlu0 %v614, 8
  %v638 = vpop.permute.xlu0 %637
  %639 = vrot.lane.b32.xlu0 %v616, 8
  %v640 = vpop.permute.xlu0 %639
  %641 = vrot.lane.b32.xlu0 %v618, 8
  %v642 = vpop.permute.xlu0 %641
  %643 = vrot.lane.b32.xlu0 %v620, 8
  %v644 = vpop.permute.xlu0 %643
  %645 = vrot.lane.b32.xlu0 %v622, 8
  %v646 = vpop.permute.xlu0 %645
  %647 = vrot.lane.b32.xlu0 %v624, 8
  %v648 = vpop.permute.xlu0 %647
  %v657 = vsel %vm503, %v20, %v634
  %v658 = vsel %vm503, %v21, %v636
  %v659 = vsel %vm503, %v22, %v638
  %v660 = vsel %vm503, %v23, %v640
  %v661 = vsel %vm503, %v24, %v642
  %v662 = vsel %vm503, %v25, %v644
  %v663 = vsel %vm503, %v26, %v646
  %v664 = vsel %vm503, %v27, %v648
  %v665 = vpack.c.bf16 %v658, %v657
  %v666 = vpack.c.bf16 %v660, %v659
  %v667 = vpack.c.bf16 %v662, %v661
  %v668 = vpack.c.bf16 %v664, %v663
  %v670 = vsel %vm272, %v491, 0
  %v673 = vsel %vm272, %v492, 0
  %v676 = vsel %vm272, %v493, 0
  %v679 = vsel %vm272, %v494, 0
  %681 = vmatprep.subr.bf16.mxu0 0
  %682 = vmatpush1.bf16.msra.mxu0 %v665
  %683 = vmatprep.subr.bf16.mxu0 0
  %684 = vmatpush1.bf16.msra.mxu0 %v666
  %685 = vmatprep.subr.bf16.mxu0 0
  %686 = vmatpush1.bf16.msra.mxu0 %v667
  %687 = vmatprep.subr.bf16.mxu0 0
  %688 = vmatpush1.bf16.msra.mxu0 %v668
  %689 = vmatprep.subr.bf16.mxu0 0
  %690 = vmatpush1.bf16.msra.mxu0 0
  %691 = vmatprep.subr.bf16.mxu0 0
  %692 = vmatpush1.bf16.msra.mxu0 0
  %693 = vmatprep.subr.bf16.mxu0 0
  %694 = vmatpush1.bf16.msra.mxu0 0
  %695 = vmatprep.subr.bf16.mxu0 0
  %696 = vmatpush1.bf16.msra.mxu0 0
  %697 = vmatprep.subr.bf16.mxu0 0
  %698 = vmatpush1.bf16.msra.mxu0 0
  %699 = vmatprep.subr.bf16.mxu0 0
  %700 = vmatpush1.bf16.msra.mxu0 0
  %701 = vmatprep.subr.bf16.mxu0 0
  %702 = vmatpush1.bf16.msra.mxu0 0
  %703 = vmatprep.subr.bf16.mxu0 0
  %704 = vmatpush1.bf16.msra.mxu0 0
  %705 = vmatprep.subr.bf16.mxu0 0
  %706 = vmatpush1.bf16.msra.mxu0 0
  %707 = vmatprep.subr.bf16.mxu0 0
  %708 = vmatpush1.bf16.msra.mxu0 0
  %709 = vmatprep.subr.bf16.mxu0 0
  %710 = vmatpush1.bf16.msra.mxu0 0
  %711 = vmatprep.subr.bf16.mxu0 0
  %712 = vmatpush1.bf16.msra.mxu0 0
  %713 = vmatprep.mubr.bf16.mxu0 0
  %714 = vmatmul.mubr.bf16.gmra.mrb[0].mxu0 %v670
  %v715 = vpop.f32.mrb[0].mxu0
  %v716 = vadd.f32 0.0, %v715
  %v717 = vpop.f32.mrb[0].mxu0
  %v718 = vpop.f32.mrb[0].mxu0
  %v719 = vadd.f32 0.0, %v718
  %v720 = vpop.f32.mrb[0].mxu0
  %721 = vmatprep.mubr.bf16.mxu0 0
  %722 = vmatmul.mubr.bf16.gmra.mrb[0].mxu0 %v673
  %v723 = vpop.f32.mrb[0].mxu0
  %v724 = vadd.f32 0.0, %v723
  %v725 = vpop.f32.mrb[0].mxu0
  %v726 = vpop.f32.mrb[0].mxu0
  %v727 = vadd.f32 0.0, %v726
  %v728 = vpop.f32.mrb[0].mxu0
  %729 = vmatprep.mubr.bf16.mxu0 0
  %730 = vmatmul.mubr.bf16.gmra.mrb[0].mxu0 %v676
  %v731 = vpop.f32.mrb[0].mxu0
  %v732 = vadd.f32 0.0, %v731
  %v733 = vpop.f32.mrb[0].mxu0
  %v734 = vpop.f32.mrb[0].mxu0
  %v735 = vadd.f32 0.0, %v734
  %v736 = vpop.f32.mrb[0].mxu0
  %737 = vmatprep.mubr.bf16.mxu0 0
  %738 = vmatmul.mubr.bf16.gmra.mrb[0].mxu0 %v679
  %v739 = vpop.f32.mrb[0].mxu0
  %v740 = vadd.f32 0.0, %v739
  %v741 = vpop.f32.mrb[0].mxu0
  %v742 = vpop.f32.mrb[0].mxu0
  %v743 = vadd.f32 0.0, %v742
  %v744 = vpop.f32.mrb[0].mxu0
  %745 = vdwg.mxu0
  %746 = vxpose.xlu0.b32.start [1/16] %v657, 128
  %747 = vxpose.xlu0.b32.cont [2/16] %v658, 128
  %748 = vxpose.xlu0.b32.cont [3/16] %v659, 128
  %749 = vxpose.xlu0.b32.cont [4/16] %v660, 128
  %750 = vxpose.xlu0.b32.cont [5/16] %v661, 128
  %751 = vxpose.xlu0.b32.cont [6/16] %v662, 128
  %752 = vxpose.xlu0.b32.cont [7/16] %v663, 128
  %753 = vxpose.xlu0.b32.cont [8/16] %v664, 128
  %754 = vxpose.xlu0.b32.cont [9/16] 0.0, 128
  %755 = vxpose.xlu0.b32.cont [10/16] 0.0, 128
  %756 = vxpose.xlu0.b32.cont [11/16] 0.0, 128
  %757 = vxpose.xlu0.b32.cont [12/16] 0.0, 128
  %758 = vxpose.xlu0.b32.cont [13/16] 0.0, 128
  %759 = vxpose.xlu0.b32.cont [14/16] 0.0, 128
  %760 = vxpose.xlu0.b32.cont [15/16] 0.0, 128
  %761 = vxpose.xlu0.b32.end [16/16] 0.0, 128
  %v762 = vpop.trf.xlu0
  %v763 = vpop.trf.xlu0
  %v764 = vpop.trf.xlu0
  %v765 = vpop.trf.xlu0
  %v766 = vpop.trf.xlu0
  %v767 = vpop.trf.xlu0
  %v768 = vpop.trf.xlu0
  %v769 = vpop.trf.xlu0
  %v770 = vpop.trf.xlu0
  %v771 = vpop.trf.xlu0
  %v772 = vpop.trf.xlu0
  %v773 = vpop.trf.xlu0
  %v774 = vpop.trf.xlu0
  %v775 = vpop.trf.xlu0
  %v776 = vpop.trf.xlu0
  %v777 = vpop.trf.xlu0
  %v779 = vsel %vm272, %v762, 0
  %v782 = vsel %vm272, %v763, 0
  %784 = vmatprep.subr.mxu0 0.0
  %785 = vmatpush1.msra.mxu0 %v716
  %786 = vmatprep.subr.mxu0 0.0
  %787 = vmatpush1.msra.mxu0 %v719
  %788 = vmatprep.subr.mxu0 0.0
  %789 = vmatpush1.msra.mxu0 %v724
  %790 = vmatprep.subr.mxu0 0.0
  %791 = vmatpush1.msra.mxu0 %v727
  %792 = vmatprep.subr.mxu0 0.0
  %793 = vmatpush1.msra.mxu0 %v732
  %794 = vmatprep.subr.mxu0 0.0
  %795 = vmatpush1.msra.mxu0 %v735
  %796 = vmatprep.subr.mxu0 0.0
  %797 = vmatpush1.msra.mxu0 %v740
  %798 = vmatprep.subr.mxu0 0.0
  %799 = vmatpush1.msra.mxu0 %v743
  %800 = vmatprep.subr.mxu0 0.0
  %801 = vmatpush1.msra.mxu0 0.0
  %802 = vmatprep.subr.mxu0 0.0
  %803 = vmatpush1.msra.mxu0 0.0
  %804 = vmatprep.subr.mxu0 0.0
  %805 = vmatpush1.msra.mxu0 0.0
  %806 = vmatprep.subr.mxu0 0.0
  %807 = vmatpush1.msra.mxu0 0.0
  %808 = vmatprep.subr.mxu0 0.0
  %809 = vmatpush1.msra.mxu0 0.0
  %810 = vmatprep.subr.mxu0 0.0
  %811 = vmatpush1.msra.mxu0 0.0
  %812 = vmatprep.subr.mxu0 0.0
  %813 = vmatpush1.msra.mxu0 0.0
  %814 = vmatprep.subr.mxu0 0.0
  %815 = vmatpush1.msra.mxu0 0.0
  %816 = vmatprep.subr.mxu0 0.0
  %817 = vmatpush1.msra.mxu0 0.0
  %818 = vmatprep.subr.mxu0 0.0
  %819 = vmatpush1.msra.mxu0 0.0
  %820 = vmatprep.subr.mxu0 0.0
  %821 = vmatpush1.msra.mxu0 0.0
  %822 = vmatprep.subr.mxu0 0.0
  %823 = vmatpush1.msra.mxu0 0.0
  %824 = vmatprep.subr.mxu0 0.0
  %825 = vmatpush1.msra.mxu0 0.0
  %826 = vmatprep.subr.mxu0 0.0
  %827 = vmatpush1.msra.mxu0 0.0
  %828 = vmatprep.subr.mxu0 0.0
  %829 = vmatpush1.msra.mxu0 0.0
  %830 = vmatprep.subr.mxu0 0.0
  %831 = vmatpush1.msra.mxu0 0.0
  %832 = vmatprep.subr.mxu0 0.0
  %833 = vmatpush1.msra.mxu0 0.0
  %834 = vmatprep.subr.mxu0 0.0
  %835 = vmatpush1.msra.mxu0 0.0
  %836 = vmatprep.subr.mxu0 0.0
  %837 = vmatpush1.msra.mxu0 0.0
  %838 = vmatprep.subr.mxu0 0.0
  %839 = vmatpush1.msra.mxu0 0.0
  %840 = vmatprep.subr.mxu0 0.0
  %841 = vmatpush1.msra.mxu0 0.0
  %842 = vmatprep.subr.mxu0 0.0
  %843 = vmatpush1.msra.mxu0 0.0
  %844 = vmatprep.subr.mxu0 0.0
  %845 = vmatpush1.msra.mxu0 0.0
  %846 = vmatprep.subr.mxu0 0.0
  %847 = vmatpush1.msra.mxu0 0.0
  %848 = vmatprep.mubr.f32.mxu0 0.0
  %849 = vmatmul.mubr.f32.gmra.mrb[0].mxu0 %v779
  %v850 = vpop.f32.mrb[0].mxu0
  %v851 = vadd.f32 0.0, %v850
  %v852 = vpop.f32.mrb[0].mxu0
  %853 = vmatprep.mubr.f32.mxu0 0.0
  %854 = vmatmul.mubr.f32.gmra.mrb[0].mxu0 %v782
  %v855 = vpop.f32.mrb[0].mxu0
  %v856 = vadd.f32 0.0, %v855
  %v857 = vpop.f32.mrb[0].mxu0
  %858 = vdwg.mxu0
  %v859 = vlaneseq
  %v860 = vshrl.u32 %v859, 7
  %v861 = vlaneseq
  %v862 = vand.u32 %v861, 127
  %vm863 = vcmp.eq.s32.totalorder %v860, %v862
  %v864 = vsel %vm863, %v851, 0.0
  %v865 = vsel %vm503, %v864, 0.0
  %866 = vadd.xlane.f32.xlu0 %v865
  %v867 = vpop.xlane.xlu0 %866
  %vm868 = vcmask 7168
  %v870 = vsel %vm868, %v867, 0
  %872 = vmatprep.subr.mxu0 0.0
  %873 = vmatpush1.xpose.msra.mxu0 %v870
  %874 = vmatprep.subr.mxu0 0.0
  %875 = vmatpush1.xpose.msra.mxu0 0.0
  %876 = vmatprep.subr.mxu0 0.0
  %877 = vmatpush1.xpose.msra.mxu0 0.0
  %878 = vmatprep.subr.mxu0 0.0
  %879 = vmatpush1.xpose.msra.mxu0 0.0
  %880 = vmatprep.subr.mxu0 0.0
  %881 = vmatpush1.xpose.msra.mxu0 0.0
  %882 = vmatprep.subr.mxu0 0.0
  %883 = vmatpush1.xpose.msra.mxu0 0.0
  %884 = vmatprep.subr.mxu0 0.0
  %885 = vmatpush1.xpose.msra.mxu0 0.0
  %886 = vmatprep.subr.mxu0 0.0
  %887 = vmatpush1.xpose.msra.mxu0 0.0
  %888 = vmatprep.subr.mxu0 0.0
  %889 = vmatpush1.xpose.msra.mxu0 0.0
  %890 = vmatprep.subr.mxu0 0.0
  %891 = vmatpush1.xpose.msra.mxu0 0.0
  %892 = vmatprep.subr.mxu0 0.0
  %893 = vmatpush1.xpose.msra.mxu0 0.0
  %894 = vmatprep.subr.mxu0 0.0
  %895 = vmatpush1.xpose.msra.mxu0 0.0
  %896 = vmatprep.subr.mxu0 0.0
  %897 = vmatpush1.xpose.msra.mxu0 0.0
  %898 = vmatprep.subr.mxu0 0.0
  %899 = vmatpush1.xpose.msra.mxu0 0.0
  %900 = vmatprep.subr.mxu0 0.0
  %901 = vmatpush1.xpose.msra.mxu0 0.0
  %902 = vmatprep.subr.mxu0 0.0
  %903 = vmatpush1.xpose.msra.mxu0 0.0
  %904 = vmatprep.subr.mxu0 0.0
  %905 = vmatpush1.xpose.msra.mxu0 0.0
  %906 = vmatprep.subr.mxu0 0.0
  %907 = vmatpush1.xpose.msra.mxu0 0.0
  %908 = vmatprep.subr.mxu0 0.0
  %909 = vmatpush1.xpose.msra.mxu0 0.0
  %910 = vmatprep.subr.mxu0 0.0
  %911 = vmatpush1.xpose.msra.mxu0 0.0
  %912 = vmatprep.subr.mxu0 0.0
  %913 = vmatpush1.xpose.msra.mxu0 0.0
  %914 = vmatprep.subr.mxu0 0.0
  %915 = vmatpush1.xpose.msra.mxu0 0.0
  %916 = vmatprep.subr.mxu0 0.0
  %917 = vmatpush1.xpose.msra.mxu0 0.0
  %918 = vmatprep.subr.mxu0 0.0
  %919 = vmatpush1.xpose.msra.mxu0 0.0
  %920 = vmatprep.subr.mxu0 0.0
  %921 = vmatpush1.xpose.msra.mxu0 0.0
  %922 = vmatprep.subr.mxu0 0.0
  %923 = vmatpush1.xpose.msra.mxu0 0.0
  %924 = vmatprep.subr.mxu0 0.0
  %925 = vmatpush1.xpose.msra.mxu0 0.0
  %926 = vmatprep.subr.mxu0 0.0
  %927 = vmatpush1.xpose.msra.mxu0 0.0
  %928 = vmatprep.subr.mxu0 0.0
  %929 = vmatpush1.xpose.msra.mxu0 0.0
  %930 = vmatprep.subr.mxu0 0.0
  %931 = vmatpush1.xpose.msra.mxu0 0.0
  %932 = vmatprep.subr.mxu0 0.0
  %933 = vmatpush1.xpose.msra.mxu0 0.0
  %934 = vmatprep.subr.mxu0 0.0
  %935 = vmatpush1.xpose.msra.mxu0 0.0
  %936 = vmatprep.mubr.f32.mxu0 0.0
  %937 = vmatmul.mubr.f32.gmra.mrb[0].mxu0 %v870
  %v938 = vpop.f32.mrb[0].mxu0
  %v939 = vadd.f32 0.0, %v938
  %v940 = vpop.f32.mrb[0].mxu0
  %941 = vdwg.mxu0
  %v942 = vmax.f32 %v851, 1e-09
  %v943 = vmax.f32 %v939, 1e-18
  %v944 = vrsqrt.pop %v943
  %v945 = vmul.f32 %v943, %v944
  %vm946 = vcmp.eq.f32.partialorder %v943, inf
  %v947 = vsel %vm946, %v943, %v945
  %vm948 = vcmp.eq.f32.partialorder %v943, 0.0
  %v949 = vand.u32 %v943, 2147483648
  %v950 = vsel %vm948, %v949, %v947
  %v951 = vrcp.pop %v950
  %v952 = vmul.f32 %v942, %v951
  %v953 = vsel %vm503, %v952, 0.0
  %954 = vadd.xlane.f32.xlu0 %v953
  %v955 = vpop.xlane.xlu0 %954
  %v956 = vrot.slane %v955, 4
  %v957 = vadd.f32 %v955, %v956
  %v958 = vrot.slane %v957, 2
  %v959 = vadd.f32 %v957, %v958
  %v960 = vrot.slane %v959, 1
  %v961 = vadd.f32 %v959, %v960
  %v962 = vsel %vm863, %v952, 0.0
  %v963 = vsel %vm503, %v962, 0.0
  %964 = vadd.xlane.f32.xlu0 %v963
  %v965 = vpop.xlane.xlu0 %964
  %v966 = vrot.slane %v965, 4
  %v967 = vadd.f32 %v965, %v966
  %v968 = vrot.slane %v967, 2
  %v969 = vadd.f32 %v967, %v968
  %v970 = vrot.slane %v969, 1
  %v971 = vadd.f32 %v969, %v970
  %v972 = vsub.f32 %v961, %v971
  %v973 = vmul.f32 %v972, 0.017857144
  %975 = vrot.lane.b32.xlu0 %v856, 120
  %v976 = vpop.permute.xlu0 %975
  %v978 = vsel %vm863, %v976, 0.0
  %v979 = vsel %vm503, %v978, 0.0
  %980 = vadd.xlane.f32.xlu0 %v979
  %v981 = vpop.xlane.xlu0 %980
  %v983 = vsel %vm868, %v981, 0
  %985 = vmatprep.subr.mxu0 0.0
  %986 = vmatpush1.xpose.msra.mxu0 %v983
  %987 = vmatprep.subr.mxu0 0.0
  %988 = vmatpush1.xpose.msra.mxu0 0.0
  %989 = vmatprep.subr.mxu0 0.0
  %990 = vmatpush1.xpose.msra.mxu0 0.0
  %991 = vmatprep.subr.mxu0 0.0
  %992 = vmatpush1.xpose.msra.mxu0 0.0
  %993 = vmatprep.subr.mxu0 0.0
  %994 = vmatpush1.xpose.msra.mxu0 0.0
  %995 = vmatprep.subr.mxu0 0.0
  %996 = vmatpush1.xpose.msra.mxu0 0.0
  %997 = vmatprep.subr.mxu0 0.0
  %998 = vmatpush1.xpose.msra.mxu0 0.0
  %999 = vmatprep.subr.mxu0 0.0
  %1000 = vmatpush1.xpose.msra.mxu0 0.0
  %1001 = vmatprep.subr.mxu0 0.0
  %1002 = vmatpush1.xpose.msra.mxu0 0.0
  %1003 = vmatprep.subr.mxu0 0.0
  %1004 = vmatpush1.xpose.msra.mxu0 0.0
  %1005 = vmatprep.subr.mxu0 0.0
  %1006 = vmatpush1.xpose.msra.mxu0 0.0
  %1007 = vmatprep.subr.mxu0 0.0
  %1008 = vmatpush1.xpose.msra.mxu0 0.0
  %1009 = vmatprep.subr.mxu0 0.0
  %1010 = vmatpush1.xpose.msra.mxu0 0.0
  %1011 = vmatprep.subr.mxu0 0.0
  %1012 = vmatpush1.xpose.msra.mxu0 0.0
  %1013 = vmatprep.subr.mxu0 0.0
  %1014 = vmatpush1.xpose.msra.mxu0 0.0
  %1015 = vmatprep.subr.mxu0 0.0
  %1016 = vmatpush1.xpose.msra.mxu0 0.0
  %1017 = vmatprep.subr.mxu0 0.0
  %1018 = vmatpush1.xpose.msra.mxu0 0.0
  %1019 = vmatprep.subr.mxu0 0.0
  %1020 = vmatpush1.xpose.msra.mxu0 0.0
  %1021 = vmatprep.subr.mxu0 0.0
  %1022 = vmatpush1.xpose.msra.mxu0 0.0
  %1023 = vmatprep.subr.mxu0 0.0
  %1024 = vmatpush1.xpose.msra.mxu0 0.0
  %1025 = vmatprep.subr.mxu0 0.0
  %1026 = vmatpush1.xpose.msra.mxu0 0.0
  %1027 = vmatprep.subr.mxu0 0.0
  %1028 = vmatpush1.xpose.msra.mxu0 0.0
  %1029 = vmatprep.subr.mxu0 0.0
  %1030 = vmatpush1.xpose.msra.mxu0 0.0
  %1031 = vmatprep.subr.mxu0 0.0
  %1032 = vmatpush1.xpose.msra.mxu0 0.0
  %1033 = vmatprep.subr.mxu0 0.0
  %1034 = vmatpush1.xpose.msra.mxu0 0.0
  %1035 = vmatprep.subr.mxu0 0.0
  %1036 = vmatpush1.xpose.msra.mxu0 0.0
  %1037 = vmatprep.subr.mxu0 0.0
  %1038 = vmatpush1.xpose.msra.mxu0 0.0
  %1039 = vmatprep.subr.mxu0 0.0
  %1040 = vmatpush1.xpose.msra.mxu0 0.0
  %1041 = vmatprep.subr.mxu0 0.0
  %1042 = vmatpush1.xpose.msra.mxu0 0.0
  %1043 = vmatprep.subr.mxu0 0.0
  %1044 = vmatpush1.xpose.msra.mxu0 0.0
  %1045 = vmatprep.subr.mxu0 0.0
  %1046 = vmatpush1.xpose.msra.mxu0 0.0
  %1047 = vmatprep.subr.mxu0 0.0
  %1048 = vmatpush1.xpose.msra.mxu0 0.0
  %1049 = vmatprep.mubr.f32.mxu0 0.0
  %1050 = vmatmul.mubr.f32.gmra.mrb[0].mxu0 %v983
  %v1051 = vpop.f32.mrb[0].mxu0
  %v1052 = vadd.f32 0.0, %v1051
  %v1053 = vpop.f32.mrb[0].mxu0
  %1054 = vdwg.mxu0
  %v1055 = vmax.f32 %v856, 1e-09
  %v1056 = vmax.f32 %v1052, 1e-18
  %v1057 = vrsqrt.pop %v1056
  %v1058 = vmul.f32 %v1056, %v1057
  %vm1059 = vcmp.eq.f32.partialorder %v1056, inf
  %v1060 = vsel %vm1059, %v1056, %v1058
  %vm1061 = vcmp.eq.f32.partialorder %v1056, 0.0
  %v1062 = vand.u32 %v1056, 2147483648
  %v1063 = vsel %vm1061, %v1062, %v1060
  %1065 = vrot.lane.b32.xlu0 %v1063, 8
  %v1066 = vpop.permute.xlu0 %1065
  %v1068 = vrcp.pop %v1066
  %v1069 = vmul.f32 %v1055, %v1068
  %1071 = vrot.lane.b32.xlu0 %v1069, 120
  %v1072 = vpop.permute.xlu0 %1071
  %v1074 = vsel %vm503, %v1072, 0.0
  %1075 = vadd.xlane.f32.xlu0 %v1074
  %v1076 = vpop.xlane.xlu0 %1075
  %v1077 = vrot.slane %v1076, 4
  %v1078 = vadd.f32 %v1076, %v1077
  %v1079 = vrot.slane %v1078, 2
  %v1080 = vadd.f32 %v1078, %v1079
  %v1081 = vrot.slane %v1080, 1
  %v1082 = vadd.f32 %v1080, %v1081
  %v1083 = vsel %vm863, %v1072, 0.0
  %v1084 = vsel %vm503, %v1083, 0.0
  %1085 = vadd.xlane.f32.xlu0 %v1084
  %v1086 = vpop.xlane.xlu0 %1085
  %v1087 = vrot.slane %v1086, 4
  %v1088 = vadd.f32 %v1086, %v1087
  %v1089 = vrot.slane %v1088, 2
  %v1090 = vadd.f32 %v1088, %v1089
  %v1091 = vrot.slane %v1090, 1
  %v1092 = vadd.f32 %v1090, %v1091
  %v1093 = vsub.f32 %v1082, %v1092
  %v1094 = vmul.f32 %v1093, 0.017857144
  %vm1095 = vcmp.eq.s32.totalorder %v862, 0
  %v1096 = vsel %vm1095, %v973, 0.0
  %vm1097 = vcmp.eq.s32.totalorder %v862, 1
  %v1098 = vsel %vm1097, %v576, 0.0
  %v1099 = vadd.f32 %v1096, %v1098
  %vm1100 = vcmp.eq.s32.totalorder %v862, 2
  %v1101 = vsel %vm1100, %v1094, 0.0
  %v1102 = vadd.f32 %v1099, %v1101
  %1103 = vst [vmem:[%s2] sm:$0x1] %v1102
  // Predicated region
  $region17: #{loss_forward.1} parent=0 // pred_check
    _
  $region18: #{loss_forward.1} parent=0 // pred_check_branch
    %1105 = sbr.rel (0) target = $region20
  $region19: #{loss_forward.1} parent=0 // pred_region
    _
  $region20: #{loss_forward.1} parent=0 // pred_fallthru
    _
  // Predicated region
  $region21: #{loss_forward.1} parent=0 // pred_check
    _
  $region22: #{loss_forward.1} parent=0 // pred_check_branch
    %1107 = sbr.rel (0) target = $region24
  $region23: #{loss_forward.1} parent=0 // pred_region
    _
  $region24: #{loss_forward.1} parent=0 // pred_fallthru
    _

</llo_original>
